<compile_context>
chip_gen: v5e
topology: v5e:2x2
jax: 0.10.0
libtpu: 0.0.40
codegen_flags: <defaults>
</compile_context>

<pallas_src>
import functools

import jax
import jax.numpy as jnp
from jax.experimental import pallas as pl
from jax.experimental.pallas import tpu as pltpu


def _round_up(x, m):
    return ((x + m - 1) // m) * m


# ---------------- row-tiled matmul: O = X @ W  (bias already folded into W) ----------------
def _matmul_rows_kernel(x_ref, w_ref, o_ref):
    o_ref[...] = jnp.dot(x_ref[...], w_ref[...],
                         preferred_element_type=jnp.float32).astype(o_ref.dtype)


def _matmul_rows(x, w, tr):
    rows, kdim = x.shape
    _, cols = w.shape
    return pl.pallas_call(
        _matmul_rows_kernel,
        out_shape=jax.ShapeDtypeStruct((rows, cols), jnp.float32),
        grid=(rows // tr,),
        in_specs=[
            pl.BlockSpec((tr, kdim), lambda r: (r, 0)),
            pl.BlockSpec((kdim, cols), lambda r: (0, 0)),   # W resident across row tiles
        ],
        out_specs=pl.BlockSpec((tr, cols), lambda r: (r, 0)),
        compiler_params=pltpu.CompilerParams(
            dimension_semantics=("parallel",)),
    )(x, w)


# ------------- aggregation: OUT = A @ H, accumulate directly into the output block -------------
def _aggregate_kernel(adj_ref, h_ref, out_ref, *, tk, resident):
    k = pl.program_id(1)

    @pl.when(k == 0)
    def _():
        out_ref[...] = jnp.zeros_like(out_ref)

    a = adj_ref[...].astype(jnp.float32)          # int8/bf16 storage -> f32 for the MXU
    if resident:
        start = pl.multiple_of(k * tk, 128)       # H held fully in VMEM; slice per k-step
        h = h_ref[pl.ds(start, tk), :]
    else:
        h = h_ref[...]
    out_ref[...] += jnp.dot(a, h, preferred_element_type=jnp.float32)


def _aggregate(adj_p, h, tm, tk, resident_h_bytes):
    n_dst, n_src = adj_p.shape
    _, width = h.shape
    s_a = jnp.dtype(adj_p.dtype).itemsize
    h_bytes = h.size * jnp.dtype(h.dtype).itemsize
    # BlockSpecs are double-buffered -> count 2x when deciding residency.
    resident = 2 * h_bytes <= resident_h_bytes

    grid = (n_dst // tm, n_src // tk)
    if resident:
        h_spec = pl.BlockSpec((n_src, width), lambda i, k: (0, 0))   # DMA'd once, stays in VMEM
    else:
        h_spec = pl.BlockSpec((tk, width), lambda i, k: (k, 0))      # streamed per k-step

    vmem_bytes = (2 * tm * tk * s_a
                  + 2 * (n_src if resident else tk) * width * 4
                  + 2 * tm * width * 4)
    vmem_limit = int(min(max(vmem_bytes + (8 << 20), 32 << 20), 56 << 20))

    h_reads = 1 if resident else (n_dst // tm)
    flops = 2 * n_dst * n_src * width
    bytes_accessed = n_dst * n_src * s_a + h_reads * h_bytes + n_dst * width * 4

    kernel = functools.partial(_aggregate_kernel, tk=tk, resident=resident)
    return pl.pallas_call(
        kernel,
        out_shape=jax.ShapeDtypeStruct((n_dst, width), jnp.float32),
        grid=grid,
        in_specs=[
            pl.BlockSpec((tm, tk), lambda i, k: (i, k)),   # A[dst, src] tile
            h_spec,
        ],
        out_specs=pl.BlockSpec((tm, width), lambda i, k: (i, 0)),
        compiler_params=pltpu.CompilerParams(
            dimension_semantics=("parallel", "arbitrary"),
            vmem_limit_bytes=vmem_limit),
        cost_estimate=pl.CostEstimate(flops=int(flops), transcendentals=0,
                                      bytes_accessed=int(bytes_accessed)),
    )(adj_p, h)


def gnn_forward(adj, feat, weight_t, bias, *, tm=512, tk=512,
                adj_dtype=None, resident_h_bytes=16 << 20):
    """out = A @ (feat @ W^T + b).

    adj:       [N, N]                A[dst, src] edge weight (0 where no edge)
    feat:      [N, in_feats]
    weight_t:  [in_feats, out_feats] (nn.Linear weight, pre-transposed)
    bias:      [out_feats] or [1, out_feats]
    adj_dtype: storage dtype for the dense adjacency stream. int8 is exact for 0/1
               graphs (4x fewer A bytes); bf16 halves them but rounds weighted edges;
               None keeps adj.dtype (typically f32 = exact for weighted graphs).
    """
    n, in_feats = feat.shape
    out_feats = weight_t.shape[1]
    bias = jnp.asarray(bias).reshape(-1).astype(jnp.float32)

    # Cast A to its storage dtype BEFORE padding: one HBM materialization of the big matrix.
    adj_store = adj if adj_dtype is None else adj.astype(adj_dtype)
    s_a = jnp.dtype(adj_store.dtype).itemsize
    sub = {1: 32, 2: 16}.get(s_a, 8)          # dst sublane multiple matching A's packing

    # Feature widths: +1 column folds the bias into the matmul.
    in_pad = _round_up(in_feats + 1, 128)
    f_pad = _round_up(out_feats, 128)

    # Validate / round user tile sizes onto (sublane, lane) multiples.
    tm = _round_up(max(tm, sub), sub)
    tk = _round_up(max(tk, 128), 128)

    # Node dims: pad only to sublane/lane multiples plus the chosen tile (default tk=512
    # caps padding waste), NOT to a huge fixed tile.
    n_sub = _round_up(n, sub)
    tm_eff = min(tm, n_sub)
    if n_sub // tm_eff < 2 and n_sub >= 2 * sub:       # megacore (v7x): >= 2 dst tiles
        tm_eff = _round_up(-(-n_sub // 2), sub)
    n_dst = _round_up(n_sub, tm_eff)

    n_lane = _round_up(n, 128)
    tk_eff = min(tk, n_lane)
    n_src = _round_up(n_lane, tk_eff)

    # Zero padding keeps the math exact: padded src columns of A are zero, padded rows of
    # X_aug (including its ones-column) are zero, padded dst rows / feature columns are
    # sliced off at the end.
    adj_p = jnp.pad(adj_store, ((0, n_dst - n), (0, n_src - n)))

    # X_aug = [X | 1 | 0...]  (ones only on real rows), W_aug = [W^T ; b ; 0...]
    # so that X_aug @ W_aug == X @ W^T + b and (A @ X_aug) @ W_aug == A @ (X @ W^T + b).
    x_aug = jnp.pad(feat.astype(jnp.float32),
                    ((0, n_src - n), (0, in_pad - in_feats)))
    x_aug = x_aug.at[:, in_feats].set((jnp.arange(n_src) < n).astype(jnp.float32))

    w_aug = jnp.zeros((in_pad, f_pad), jnp.float32)
    w_aug = w_aug.at[:in_feats, :out_feats].set(weight_t.astype(jnp.float32))
    w_aug = w_aug.at[in_feats, :out_feats].set(bias)

    if in_pad < f_pad:
        # Aggregate-first: the N x N matmul runs at the narrower width in_pad.
        y = _aggregate(adj_p, x_aug, tm_eff, tk_eff, resident_h_bytes)
        out_p = _matmul_rows(y, w_aug, tm_eff)
    else:
        # Linear-first: H computed once, then streamed (or held resident) for A @ H.
        h = _matmul_rows(x_aug, w_aug, tk_eff)
        out_p = _aggregate(adj_p, h, tm_eff, tk_eff, resident_h_bytes)

    return out_p[:n, :out_feats]


def graphconv_forward(adj_mask, feat, weight, bias, eweight=None, **kw):
    """Mirror of the PyTorch/DGL module. weight is nn.Linear layout [out_feats, in_feats]."""
    weight_t = jnp.asarray(weight).T
    if eweight is None:
        kw.setdefault('adj_dtype', jnp.int8)       # exact for 0/1 edges, 4x fewer A bytes
        return gnn_forward(jnp.asarray(adj_mask), feat, weight_t, bias, **kw)
    adj = jnp.asarray(adj_mask).astype(jnp.float32) * eweight
    return gnn_forward(adj, feat, weight_t, bias, **kw)


def _ref(adj, feat, weight_t, bias):
    h = jnp.dot(feat, weight_t, precision='highest') + bias.reshape(1, -1)
    return jnp.dot(adj, h, precision='highest')


if __name__ == "__main__":
    key = jax.random.PRNGKey(0)
    k_feat, k_w, k_b, k_edge, k_ew = jax.random.split(key, 5)

    # --- Test 1/2: small graph consistent with the module (N=8, 32 -> 16). ---
    N, in_feats, out_feats = 8, 32, 16
    feat = jax.random.normal(k_feat, (N, in_feats), dtype=jnp.float32)
    bound = 1.0 / jnp.sqrt(in_feats)
    weight = jax.random.uniform(k_w, (out_feats, in_feats),
                                minval=-bound, maxval=bound, dtype=jnp.float32)
    bias = jax.random.uniform(k_b, (out_feats,),
                              minval=-bound, maxval=bound, dtype=jnp.float32)
    edge_mask = (jax.random.uniform(k_edge, (N, N)) < 0.4).astype(jnp.float32)
    eweight = jax.random.normal(k_ew, (N, N), dtype=jnp.float32)

    out_plain = jax.block_until_ready(graphconv_forward(edge_mask, feat, weight, bias))
    out_weighted = jax.block_until_ready(
        graphconv_forward(edge_mask, feat, weight, bias, eweight=eweight))

    ref_plain = _ref(edge_mask, feat, weight.T, bias)
    ref_weighted = _ref(edge_mask * eweight, feat, weight.T, bias)
    assert jnp.allclose(out_plain, ref_plain, atol=1e-4, rtol=1e-4)
    assert jnp.allclose(out_weighted, ref_weighted, atol=1e-4, rtol=1e-4)

    # --- Test 3: multi-tile, unweighted int8, aggregate-first (in < out), streamed-H path. ---
    N3, in3, out3 = 256, 64, 200
    k3a, k3b, k3c, k3d = jax.random.split(jax.random.PRNGKey(1), 4)
    feat3 = jax.random.normal(k3a, (N3, in3), dtype=jnp.float32)
    w3 = jax.random.normal(k3b, (out3, in3), dtype=jnp.float32) * 0.05
    b3 = jax.random.normal(k3c, (out3,), dtype=jnp.float32) * 0.05
    adj3 = (jax.random.uniform(k3d, (N3, N3)) < 0.1).astype(jnp.float32)
    out3_k = jax.block_until_ready(
        graphconv_forward(adj3, feat3, w3, b3, tm=64, tk=128, resident_h_bytes=0))
    assert jnp.allclose(out3_k, _ref(adj3, feat3, w3.T, b3), atol=2e-3, rtol=2e-3)

    # --- Test 4: multi-tile, weighted f32, linear-first (in > out), ragged N, resident H. ---
    N4, in4, out4 = 300, 130, 60
    k4a, k4b, k4c, k4d, k4e = jax.random.split(jax.random.PRNGKey(2), 5)
    feat4 = jax.random.normal(k4a, (N4, in4), dtype=jnp.float32)
    w4 = jax.random.normal(k4b, (out4, in4), dtype=jnp.float32) * 0.05
    b4 = jax.random.normal(k4c, (out4,), dtype=jnp.float32) * 0.05
    mask4 = (jax.random.uniform(k4d, (N4, N4)) < 0.2).astype(jnp.float32)
    ew4 = jax.random.normal(k4e, (N4, N4), dtype=jnp.float32)
    out4_k = jax.block_until_ready(
        graphconv_forward(mask4, feat4, w4, b4, eweight=ew4))
    assert jnp.allclose(out4_k, _ref(mask4 * ew4, feat4, w4.T, b4), atol=2e-3, rtol=2e-3)

    print("KERNEL_OK")
</pallas_src>

<mosaic_0001>
module attributes {stable_mosaic.version = 11 : i64} {
  func.func @_matmul_rows_kernel(%arg0: i32, %arg1: memref<128x128xf32, #tpu.memory_space<vmem>>, %arg2: memref<128x128xf32, #tpu.memory_space<vmem>>, %arg3: memref<128x128xf32, #tpu.memory_space<vmem>>) attributes {dimension_semantics = [#tpu.dimension_semantics<parallel>], iteration_bounds = array<i64: 1>, scalar_prefetch = 0 : i64, scratch_operands = 0 : i64, tpu.core_type = #tpu.core_type<tc>, window_params = [{transform_indices = @transform_0, window_bounds = array<i64: 128, 128>}, {pipeline_mode = #tpu.pipeline_mode<synchronous>, transform_indices = @transform_1, window_bounds = array<i64: 128, 128>}, {transform_indices = @transform_2, window_bounds = array<i64: 128, 128>}]} {
    %c0 = arith.constant 0 : index
    %c0_0 = arith.constant 0 : index
    %0 = vector.load %arg1[%c0, %c0_0] : memref<128x128xf32, #tpu.memory_space<vmem>>, vector<128x128xf32>
    %c0_1 = arith.constant 0 : index
    %c0_2 = arith.constant 0 : index
    %1 = vector.load %arg2[%c0_1, %c0_2] : memref<128x128xf32, #tpu.memory_space<vmem>>, vector<128x128xf32>
    %cst = arith.constant dense<0.000000e+00> : vector<128x128xf32>
    %2 = tpu.matmul %0, %1, %cst {dimension_numbers = #tpu.dot_dimension_numbers<[1], [0], [0], [1], [0, 0, 1, 1], [], []>} : vector<128x128xf32>, vector<128x128xf32>, vector<128x128xf32> -> vector<128x128xf32>
    %c0_3 = arith.constant 0 : index
    %c0_4 = arith.constant 0 : index
    %3 = vector.load %arg3[%c0_3, %c0_4] : memref<128x128xf32, #tpu.memory_space<vmem>>, vector<128x128xf32>
    tpu.vector_store %arg3[%c0_3, %c0_4], %2 {strides = array<i32>} : memref<128x128xf32, #tpu.memory_space<vmem>>, vector<128x128xf32>,
    return
  }
  func.func @transform_0(%arg0: i32) -> (i32, i32) {
    %c0_i32 = arith.constant 0 : i32
    %c0_i32_0 = arith.constant 0 : i32
    return %arg0, %c0_i32 : i32, i32
  }
  func.func @transform_1(%arg0: i32) -> (i32, i32) {
    %c0_i32 = arith.constant 0 : i32
    %c0_i32_0 = arith.constant 0 : i32
    %c0_i32_1 = arith.constant 0 : i32
    return %c0_i32, %c0_i32_0 : i32, i32
  }
  func.func @transform_2(%arg0: i32) -> (i32, i32) {
    %c0_i32 = arith.constant 0 : i32
    %c0_i32_0 = arith.constant 0 : i32
    return %arg0, %c0_i32 : i32, i32
  }
}

</mosaic_0001>

<llo_original>
// kernel: tpu_custom_call.1
$region0: #{tpu_custom_call.1}
  #allocation0 [shape = 'u32[]', space=smem, size = 0x4, offset = 0x4, fixed_abs, tag = 'smem constant byte address 0x4 - core index']
  #allocation1 [shape = 'u32[72,128]{1,0:T(1,128)}', space=vmem, size = 0x9000, scoped, tag = 'internal scratch']
  %s0 = inlined_call_operand.hbm [shape: f32[128,128], index: 0, kind: input, shape index: {}]
  %s1 = inlined_call_operand.hbm [shape: f32[128,128], index: 1, kind: input, shape index: {}]
  %s2 = inlined_call_operand.hbm [shape: f32[128,128], index: 2, kind: output, shape index: {}]
  %s3 = sld [smem:[#allocation0]]
  $region26: #{tpu_custom_call.1} parent=0
    _
  %s5 = ssub.s32 1, %s3
  %s6 = scalar_select 0, %s5, %s3
  $region1: #{tpu_custom_call.1} parent=0
    #allocation2 [shape = 'u8[65536]{0}', space=vmem, size = 0x10000, scoped, tag = 'input window, operand 0, single buffered']
    #allocation3 [shape = 's32[1]{0}', space=sflag, size = 0x4, scoped, tag = 'scoped memory for tpu_custom_call.1']
    #allocation4 [shape = 's32[1]{0}', space=sflag, size = 0x4, scoped, tag = 'scoped memory for tpu_custom_call.1']
    #allocation5 [shape = 'u8[65536]{0}', space=vmem, size = 0x10000, scoped, tag = 'input window, operand 1, single buffered']
    #allocation6 [shape = 's32[1]{0}', space=sflag, size = 0x4, scoped, tag = 'scoped memory for tpu_custom_call.1']
    #allocation7 [shape = 'u8[65536]{0}', space=vmem, size = 0x10000, scoped, tag = 'output window, operand 0, single buffered']
    %7 = vsyncpa [#allocation3], 0
    %8 = vsyncpa [#allocation6], 0
    %9 = vsyncpa [#allocation4], 0
    // Predicated region
    $region2: #{tpu_custom_call.1} parent=1 // pred_check
      _
    $region3: #{tpu_custom_call.1} parent=1 // pred_check_branch
      %11 = sbr.rel (0) target = $region5
    $region4: #{tpu_custom_call.1} parent=1 // pred_region
      %13 = vsyncadd [#allocation3], 0
      %s14 = sshll.u32 %s0, 4
      %s15 = int_to_ptr.hbm [resolvable:$true] %s14
      %s16 = sshll.u32 [#allocation2], 4
      %s17 = int_to_ptr.vmem [resolvable:$true] %s16
      %22 = dma.hbm_to_vmem [thread:$0]  %s15, 2048, %s17, [#allocation3], 128, 128, 8
    $region5: #{tpu_custom_call.1} parent=1 // pred_fallthru
      _
    // Predicated region
    $region6: #{tpu_custom_call.1} parent=1 // pred_check
      _
    $region7: #{tpu_custom_call.1} parent=1 // pred_check_branch
      %24 = sbr.rel (0) target = $region9
    $region8: #{tpu_custom_call.1} parent=1 // pred_region
      %26 = vsyncadd [#allocation6], 0
      %s27 = sshll.u32 %s1, 4
      %s28 = int_to_ptr.hbm [resolvable:$true] %s27
      %s29 = sshll.u32 [#allocation5], 4
      %s30 = int_to_ptr.vmem [resolvable:$true] %s29
      %35 = dma.hbm_to_vmem [thread:$0]  %s28, 2048, %s30, [#allocation6], 128, 128, 8
    $region9: #{tpu_custom_call.1} parent=1 // pred_fallthru
      _
    // Predicated region
    $region10: #{tpu_custom_call.1} parent=1 // pred_check
      _
    $region11: #{tpu_custom_call.1} parent=1 // pred_check_branch
      %37 = sbr.rel (0) target = $region13
    $region12: #{tpu_custom_call.1} parent=1 // pred_region
      %39 = dma.done [#allocation3], 2048
    $region13: #{tpu_custom_call.1} parent=1 // pred_fallthru
      _
    // Predicated region
    $region14: #{tpu_custom_call.1} parent=1 // pred_check
      _
    $region15: #{tpu_custom_call.1} parent=1 // pred_check_branch
      %41 = sbr.rel (0) target = $region17
    $region16: #{tpu_custom_call.1} parent=1 // pred_region
      %43 = dma.done [#allocation6], 2048
    $region17: #{tpu_custom_call.1} parent=1 // pred_fallthru
      _
    %v44 = vld [vmem:[#allocation2] sm:$0xff]
    %v45 = vld [vmem:[#allocation2 + $0x8] sm:$0xff]
    %v46 = vld [vmem:[#allocation2 + $0x10] sm:$0xff]
    %v47 = vld [vmem:[#allocation2 + $0x18] sm:$0xff]
    %v48 = vld [vmem:[#allocation2 + $0x20] sm:$0xff]
    %v49 = vld [vmem:[#allocation2 + $0x28] sm:$0xff]
    %v50 = vld [vmem:[#allocation2 + $0x30] sm:$0xff]
    %v51 = vld [vmem:[#allocation2 + $0x38] sm:$0xff]
    %v52 = vld [vmem:[#allocation2 + $0x40] sm:$0xff]
    %v53 = vld [vmem:[#allocation2 + $0x48] sm:$0xff]
    %v54 = vld [vmem:[#allocation2 + $0x50] sm:$0xff]
    %v55 = vld [vmem:[#allocation2 + $0x58] sm:$0xff]
    %v56 = vld [vmem:[#allocation2 + $0x60] sm:$0xff]
    %v57 = vld [vmem:[#allocation2 + $0x68] sm:$0xff]
    %v58 = vld [vmem:[#allocation2 + $0x70] sm:$0xff]
    %v59 = vld [vmem:[#allocation2 + $0x78] sm:$0xff]
    %v60 = vld [vmem:[#allocation5] sm:$0xff]
    %v61 = vld [vmem:[#allocation5 + $0x8] sm:$0xff]
    %v62 = vld [vmem:[#allocation5 + $0x10] sm:$0xff]
    %v63 = vld [vmem:[#allocation5 + $0x18] sm:$0xff]
    %v64 = vld [vmem:[#allocation5 + $0x20] sm:$0xff]
    %v65 = vld [vmem:[#allocation5 + $0x28] sm:$0xff]
    %v66 = vld [vmem:[#allocation5 + $0x30] sm:$0xff]
    %v67 = vld [vmem:[#allocation5 + $0x38] sm:$0xff]
    %v68 = vld [vmem:[#allocation5 + $0x40] sm:$0xff]
    %v69 = vld [vmem:[#allocation5 + $0x48] sm:$0xff]
    %v70 = vld [vmem:[#allocation5 + $0x50] sm:$0xff]
    %v71 = vld [vmem:[#allocation5 + $0x58] sm:$0xff]
    %v72 = vld [vmem:[#allocation5 + $0x60] sm:$0xff]
    %v73 = vld [vmem:[#allocation5 + $0x68] sm:$0xff]
    %v74 = vld [vmem:[#allocation5 + $0x70] sm:$0xff]
    %v75 = vld [vmem:[#allocation5 + $0x78] sm:$0xff]
    %76 = vmatpush.msra.mxu0 %v75
    %77 = vmatpush.msra.mxu0 %v74
    %78 = vmatpush.msra.mxu0 %v73
    %79 = vmatpush.msra.mxu0 %v72
    %80 = vmatpush.msra.mxu0 %v71
    %81 = vmatpush.msra.mxu0 %v70
    %82 = vmatpush.msra.mxu0 %v69
    %83 = vmatpush.msra.mxu0 %v68
    %84 = vmatpush.msra.mxu0 %v67
    %85 = vmatpush.msra.mxu0 %v66
    %86 = vmatpush.msra.mxu0 %v65
    %87 = vmatpush.msra.mxu0 %v64
    %88 = vmatpush.msra.mxu0 %v63
    %89 = vmatpush.msra.mxu0 %v62
    %90 = vmatpush.msra.mxu0 %v61
    %91 = vmatpush.msra.mxu0 %v60
    %92 = vmatmul.f32.gmra.mxu0 %v44
    %v93 = vpop.f32.mrf.mxu0
    %v94 = vadd.f32 0.0, %v93
    %95 = vmatmul.f32.gmra.mxu0 %v45
    %v96 = vpop.f32.mrf.mxu0
    %v97 = vadd.f32 0.0, %v96
    %98 = vmatmul.f32.gmra.mxu0 %v46
    %v99 = vpop.f32.mrf.mxu0
    %v100 = vadd.f32 0.0, %v99
    %101 = vmatmul.f32.gmra.mxu0 %v47
    %v102 = vpop.f32.mrf.mxu0
    %v103 = vadd.f32 0.0, %v102
    %104 = vmatmul.f32.gmra.mxu0 %v48
    %v105 = vpop.f32.mrf.mxu0
    %v106 = vadd.f32 0.0, %v105
    %107 = vmatmul.f32.gmra.mxu0 %v49
    %v108 = vpop.f32.mrf.mxu0
    %v109 = vadd.f32 0.0, %v108
    %110 = vmatmul.f32.gmra.mxu0 %v50
    %v111 = vpop.f32.mrf.mxu0
    %v112 = vadd.f32 0.0, %v111
    %113 = vmatmul.f32.gmra.mxu0 %v51
    %v114 = vpop.f32.mrf.mxu0
    %v115 = vadd.f32 0.0, %v114
    %116 = vmatmul.f32.gmra.mxu0 %v52
    %v117 = vpop.f32.mrf.mxu0
    %v118 = vadd.f32 0.0, %v117
    %119 = vmatmul.f32.gmra.mxu0 %v53
    %v120 = vpop.f32.mrf.mxu0
    %v121 = vadd.f32 0.0, %v120
    %122 = vmatmul.f32.gmra.mxu0 %v54
    %v123 = vpop.f32.mrf.mxu0
    %v124 = vadd.f32 0.0, %v123
    %125 = vmatmul.f32.gmra.mxu0 %v55
    %v126 = vpop.f32.mrf.mxu0
    %v127 = vadd.f32 0.0, %v126
    %128 = vmatmul.f32.gmra.mxu0 %v56
    %v129 = vpop.f32.mrf.mxu0
    %v130 = vadd.f32 0.0, %v129
    %131 = vmatmul.f32.gmra.mxu0 %v57
    %v132 = vpop.f32.mrf.mxu0
    %v133 = vadd.f32 0.0, %v132
    %134 = vmatmul.f32.gmra.mxu0 %v58
    %v135 = vpop.f32.mrf.mxu0
    %v136 = vadd.f32 0.0, %v135
    %137 = vmatmul.f32.gmra.mxu0 %v59
    %v138 = vpop.f32.mrf.mxu0
    %v139 = vadd.f32 0.0, %v138
    %140 = vdwg.mxu0
    %141 = vst [vmem:[#allocation7] sm:$0xff] %v94
    %142 = vst [vmem:[#allocation7 + $0x8] sm:$0xff] %v97
    %143 = vst [vmem:[#allocation7 + $0x10] sm:$0xff] %v100
    %144 = vst [vmem:[#allocation7 + $0x18] sm:$0xff] %v103
    %145 = vst [vmem:[#allocation7 + $0x20] sm:$0xff] %v106
    %146 = vst [vmem:[#allocation7 + $0x28] sm:$0xff] %v109
    %147 = vst [vmem:[#allocation7 + $0x30] sm:$0xff] %v112
    %148 = vst [vmem:[#allocation7 + $0x38] sm:$0xff] %v115
    %149 = vst [vmem:[#allocation7 + $0x40] sm:$0xff] %v118
    %150 = vst [vmem:[#allocation7 + $0x48] sm:$0xff] %v121
    %151 = vst [vmem:[#allocation7 + $0x50] sm:$0xff] %v124
    %152 = vst [vmem:[#allocation7 + $0x58] sm:$0xff] %v127
    %153 = vst [vmem:[#allocation7 + $0x60] sm:$0xff] %v130
    %154 = vst [vmem:[#allocation7 + $0x68] sm:$0xff] %v133
    %155 = vst [vmem:[#allocation7 + $0x70] sm:$0xff] %v136
    %156 = vst [vmem:[#allocation7 + $0x78] sm:$0xff] %v139
    // Predicated region
    $region18: #{tpu_custom_call.1} parent=1 // pred_check
      _
    $region19: #{tpu_custom_call.1} parent=1 // pred_check_branch
      %158 = sbr.rel (0) target = $region21
    $region20: #{tpu_custom_call.1} parent=1 // pred_region
      %160 = vsyncadd [#allocation4], 0
      %s161 = sshll.u32 [#allocation7], 4
      %s162 = int_to_ptr.vmem [resolvable:$true] %s161
      %s163 = sshll.u32 %s2, 4
      %s164 = int_to_ptr.hbm [resolvable:$true] %s163
      %169 = dma.vmem_to_hbm [thread:$0]  %s162, 2048, %s164, [#allocation4], 128, 128, 8
    $region21: #{tpu_custom_call.1} parent=1 // pred_fallthru
      _
    // Predicated region
    $region22: #{tpu_custom_call.1} parent=1 // pred_check
      _
    $region23: #{tpu_custom_call.1} parent=1 // pred_check_branch
      %171 = sbr.rel (0) target = $region25
    $region24: #{tpu_custom_call.1} parent=1 // pred_region
      %173 = dma.done [#allocation4], 2048
    $region25: #{tpu_custom_call.1} parent=1 // pred_fallthru
      _
    %174 = vsyncpa [#allocation3], 1
    %175 = vsyncpa [#allocation6], 1
    %176 = vsyncpa [#allocation4], 1

</llo_original>
